<compile_context>
chip_gen: v6e
topology: v6e:2x2x1
jax: 0.10.0
libtpu: 0.0.40
codegen_flags: <defaults>
</compile_context>

<pallas_src>
import math

import jax
import jax.numpy as jnp
from jax import lax
from jax.experimental import pallas as pl
from jax.experimental.pallas import tpu as pltpu

# ---------------------------------------------------------------------------
# Model configuration (small, consistent with the module's __init__).
# ---------------------------------------------------------------------------
D_MODEL = 32
NUM_HEADS = 4
HEAD_DIM = D_MODEL // NUM_HEADS
D_FFN = 4 * D_MODEL          # 128
SEQ = 8
BATCH = 2
EPS = 1e-5                   # nn.LayerNorm default eps
NEG_INF = -1e30              # finite "-inf" (avoids inf-inf NaN in softmax)


def _layer_norm(x, w, b):
    mu = jnp.mean(x, axis=-1, keepdims=True)
    var = jnp.mean(jnp.square(x - mu), axis=-1, keepdims=True)
    return (x - mu) * lax.rsqrt(var + EPS) * w + b


def _gelu_exact(x):
    # nn.GELU() default = exact erf-based GELU (kept exact to match semantics;
    # tanh-approx would move the transcendental to the EUP if tolerance allows).
    return 0.5 * x * (1.0 + lax.erf(x / math.sqrt(2.0)))


# ---------------------------------------------------------------------------
# Kernel: whole batch in one invocation (no grid).
# ---------------------------------------------------------------------------
def transformer_block_kernel(x_ref, mask_ref, wqkv_ref, wo_ref,
                             f1w_ref, f2w_ref, vec_ref, out_ref):
    D, H, hd, F = D_MODEL, NUM_HEADS, HEAD_DIM, D_FFN

    x = x_ref[...]                      # [N, D] f32
    mask = mask_ref[...]                # [N, N] f32, block-diag over batch
    vec = vec_ref[...]                  # [8, 128] f32 packed vector params

    ln1w = vec[0:1, :D]
    ln1b = vec[1:2, :D]
    ln2w = vec[2:3, :D]
    ln2b = vec[3:4, :D]
    qkvb = vec[4:5, :3 * D]             # Q part already scaled by 1/sqrt(hd)
    ob = vec[5:6, :D]
    f1b = vec[6:7, :F]
    f2b = vec[7:8, :D]

    # --- LN1 (f32) + fused QKV projection (one bf16 MXU push) ----------------
    ln1 = _layer_norm(x, ln1w, ln1b)
    qkv = jnp.dot(ln1.astype(jnp.bfloat16), wqkv_ref[...],
                  preferred_element_type=jnp.float32) + qkvb      # [N, 3D] f32

    # --- per-head attention (H=4, statically unrolled) ------------------------
    ctx_parts = []
    for h in range(H):
        qh = qkv[:, h * hd:(h + 1) * hd].astype(jnp.bfloat16)           # [N, hd]
        kh = qkv[:, D + h * hd:D + (h + 1) * hd].astype(jnp.bfloat16)
        vh = qkv[:, 2 * D + h * hd:2 * D + (h + 1) * hd].astype(jnp.bfloat16)

        # scores = qh @ kh^T  (scale already folded into Q)
        s = lax.dot_general(qh, kh, (((1,), (1,)), ((), ())),
                            preferred_element_type=jnp.float32)         # [N, N]
        s = s + mask
        s = s - jnp.max(s, axis=-1, keepdims=True)
        p = jnp.exp(s)
        denom = jnp.sum(p, axis=-1, keepdims=True)

        # unnormalized PV matmul, then normalize on the small [N, hd] tile
        ctx_h = jnp.dot(p.astype(jnp.bfloat16), vh,
                        preferred_element_type=jnp.float32)              # [N, hd]
        ctx_parts.append(ctx_h * pl.reciprocal(denom, approx=True))

    ctx = jnp.concatenate(ctx_parts, axis=-1)                            # [N, D]

    # --- output projection: head-sum folded into one MXU contraction ---------
    attn = jnp.dot(ctx.astype(jnp.bfloat16), wo_ref[...],
                   preferred_element_type=jnp.float32) + ob              # [N, D]

    # --- residual + LN2 + FFN -------------------------------------------------
    x1 = x + attn
    ln2 = _layer_norm(x1, ln2w, ln2b)
    h1 = jnp.dot(ln2.astype(jnp.bfloat16), f1w_ref[...],
                 preferred_element_type=jnp.float32) + f1b               # [N, F]
    h1 = _gelu_exact(h1)
    h2 = jnp.dot(h1.astype(jnp.bfloat16), f2w_ref[...],
                 preferred_element_type=jnp.float32) + f2b               # [N, D]

    out_ref[...] = (x1 + h2).astype(out_ref.dtype)


# ---------------------------------------------------------------------------
# Wrapper-side preprocessing (all free XLA work outside the kernel).
# ---------------------------------------------------------------------------
def _prepare_inputs(params):
    """PyTorch-layout params -> fused/packed kernel inputs."""
    (ln1w, ln1b, projw, projb, ow, ob, ln2w, ln2b, f1w, f1b, f2w, f2b) = params
    D = D_MODEL
    scale = 1.0 / math.sqrt(HEAD_DIM)

    # Fold 1/sqrt(head_dim) into the Q columns (first D of the fused 3D).
    col_scale = jnp.concatenate(
        [jnp.full((D,), scale, jnp.float32), jnp.ones((2 * D,), jnp.float32)])
    wqkv = (projw * col_scale[None, :]).astype(jnp.bfloat16)    # [D, 3D]
    qkvb = projb[0] * col_scale                                  # [3D] f32

    wo = ow.astype(jnp.bfloat16)                                 # [D, D]
    wf1 = f1w.astype(jnp.bfloat16)                               # [D, F]
    wf2 = f2w.astype(jnp.bfloat16)                               # [F, D]

    # Pack all small f32 vector params into one [8, 128] array (1 DMA).
    vec = jnp.zeros((8, 128), jnp.float32)
    vec = vec.at[0, :D].set(ln1w[0])
    vec = vec.at[1, :D].set(ln1b[0])
    vec = vec.at[2, :D].set(ln2w[0])
    vec = vec.at[3, :D].set(ln2b[0])
    vec = vec.at[4, :3 * D].set(qkvb)
    vec = vec.at[5, :D].set(ob[0])
    vec = vec.at[6, :D_FFN].set(f1b[0])
    vec = vec.at[7, :D].set(f2b[0])

    return wqkv, wo, wf1, wf2, vec


def _build_full_mask(mask):
    """[B, L, L] additive mask -> [B*L, B*L] with cross-batch blocks = -1e30."""
    B, L, _ = mask.shape
    # Clamp user -inf to a finite large negative to avoid -inf - (-inf) = NaN
    # on fully masked rows (gives uniform attention there instead of NaN).
    mask = jnp.maximum(mask.astype(jnp.float32), NEG_INF)
    same = jnp.eye(B, dtype=bool)                        # [B, B]
    expanded = jnp.where(same[:, None, :, None],         # [B, 1, B, 1]
                         mask[:, :, None, :],            # [B, L, 1, L]
                         jnp.float32(NEG_INF))           # -> [B, L, B, L]
    return expanded.reshape(B * L, B * L)


def transformer_block(x, mask, params):
    B, L, D = x.shape
    N = B * L

    x2d = x.reshape(N, D)
    full_mask = _build_full_mask(mask)
    wqkv, wo, wf1, wf2, vec = _prepare_inputs(params)
    inputs = [x2d, full_mask, wqkv, wo, wf1, wf2, vec]

    out2d = pl.pallas_call(
        transformer_block_kernel,
        out_shape=jax.ShapeDtypeStruct((N, D), x.dtype),
        in_specs=[pl.BlockSpec(memory_space=pltpu.MemorySpace.VMEM)
                  for _ in inputs],
        out_specs=pl.BlockSpec(memory_space=pltpu.MemorySpace.VMEM),
    )(*inputs)

    return out2d.reshape(B, L, D)


# ---------------------------------------------------------------------------
# Pure-JAX f32 reference (mirrors the PyTorch forward) for correctness check.
# ---------------------------------------------------------------------------
def transformer_block_ref(x, mask, params):
    (ln1w, ln1b, projw, projb, ow, ob,
     ln2w, ln2b, f1w, f1b, f2w, f2b) = params
    B, L, D = x.shape

    ln_x = _layer_norm(x, ln1w[0], ln1b[0])
    proj = ln_x @ projw + projb[0]                      # [B, L, 3D]
    q, k, v = jnp.split(proj, 3, axis=-1)

    def split_heads(t):                                 # [B, L, D] -> [B, H, L, hd]
        return t.reshape(B, L, NUM_HEADS, HEAD_DIM).transpose(0, 2, 1, 3)

    q, k, v = split_heads(q), split_heads(k), split_heads(v)
    s = jnp.einsum("bhqd,bhkd->bhqk", q, k) / math.sqrt(HEAD_DIM)
    s = s + mask[:, None, :, :]
    p = jax.nn.softmax(s, axis=-1)
    attn = jnp.einsum("bhqk,bhkd->bhqd", p, v)
    attn = attn.transpose(0, 2, 1, 3).reshape(B, L, D)
    attn = attn @ ow + ob[0]

    x1 = x + attn
    ln_x2 = _layer_norm(x1, ln2w[0], ln2b[0])
    out = _gelu_exact(ln_x2 @ f1w + f1b[0]) @ f2w + f2b[0]
    return x1 + out


# ---------------------------------------------------------------------------
# Deterministic parameter init + run.
# ---------------------------------------------------------------------------
def init_params(key):
    ks = jax.random.split(key, 8)
    scale = 0.02
    ln1w = jnp.ones((1, D_MODEL), jnp.float32)
    ln1b = jnp.zeros((1, D_MODEL), jnp.float32)
    projw = scale * jax.random.normal(ks[0], (D_MODEL, 3 * D_MODEL), jnp.float32)
    projb = scale * jax.random.normal(ks[1], (1, 3 * D_MODEL), jnp.float32)
    ow = scale * jax.random.normal(ks[2], (D_MODEL, D_MODEL), jnp.float32)
    ob = scale * jax.random.normal(ks[3], (1, D_MODEL), jnp.float32)
    ln2w = jnp.ones((1, D_MODEL), jnp.float32)
    ln2b = jnp.zeros((1, D_MODEL), jnp.float32)
    f1w = scale * jax.random.normal(ks[4], (D_MODEL, D_FFN), jnp.float32)
    f1b = scale * jax.random.normal(ks[5], (1, D_FFN), jnp.float32)
    f2w = scale * jax.random.normal(ks[6], (D_FFN, D_MODEL), jnp.float32)
    f2b = scale * jax.random.normal(ks[7], (1, D_MODEL), jnp.float32)
    return [ln1w, ln1b, projw, projb, ow, ob, ln2w, ln2b, f1w, f1b, f2w, f2b]


if __name__ == "__main__":
    key = jax.random.PRNGKey(0)
    k_x, k_p = jax.random.split(key)

    x = jax.random.normal(k_x, (BATCH, SEQ, D_MODEL), jnp.float32)
    # Additive attention mask: all-zeros (no masking) for the example.
    mask = jnp.zeros((BATCH, SEQ, SEQ), jnp.float32)
    params = init_params(k_p)

    out = transformer_block(x, mask, params)
    out = jax.block_until_ready(out)

    ref = transformer_block_ref(x, mask, params)
    assert out.shape == (BATCH, SEQ, D_MODEL)
    # bf16 MXU operands + approximate reciprocal -> loosened tolerance vs the
    # pure-f32 reference (observed error is ~1e-3).
    err = float(jnp.max(jnp.abs(out - ref)))
    assert jnp.allclose(out, ref, atol=2e-2, rtol=2e-2), f"max abs err = {err}"

    print("KERNEL_OK")
</pallas_src>

<mosaic_0001>
module attributes {stable_mosaic.version = 11 : i64} {
  func.func @transformer_block_kernel(%arg0: memref<16x32xf32, #tpu.memory_space<vmem>>, %arg1: memref<16x16xf32, #tpu.memory_space<vmem>>, %arg2: memref<32x96xbf16, #tpu.memory_space<vmem>>, %arg3: memref<32x32xbf16, #tpu.memory_space<vmem>>, %arg4: memref<32x128xbf16, #tpu.memory_space<vmem>>, %arg5: memref<128x32xbf16, #tpu.memory_space<vmem>>, %arg6: memref<8x128xf32, #tpu.memory_space<vmem>>, %arg7: memref<16x32xf32, #tpu.memory_space<vmem>>) attributes {dimension_semantics = [], scalar_prefetch = 0 : i64, scratch_operands = 0 : i64, tpu.core_type = #tpu.core_type<tc>} {
    %c0 = arith.constant 0 : index
    %c0_0 = arith.constant 0 : index
    %0 = vector.load %arg0[%c0, %c0_0] : memref<16x32xf32, #tpu.memory_space<vmem>>, vector<16x32xf32>
    %c0_1 = arith.constant 0 : index
    %c0_2 = arith.constant 0 : index
    %1 = vector.load %arg1[%c0_1, %c0_2] : memref<16x16xf32, #tpu.memory_space<vmem>>, vector<16x16xf32>
    %c0_3 = arith.constant 0 : index
    %c0_4 = arith.constant 0 : index
    %2 = vector.load %arg6[%c0_3, %c0_4] : memref<8x128xf32, #tpu.memory_space<vmem>>, vector<8x128xf32>
    %3 = vector.extract_strided_slice %2 {offsets = [0, 0], sizes = [1, 32], strides = [1, 1]} : vector<8x128xf32> to vector<1x32xf32>
    %4 = vector.extract_strided_slice %2 {offsets = [1, 0], sizes = [1, 32], strides = [1, 1]} : vector<8x128xf32> to vector<1x32xf32>
    %5 = vector.extract_strided_slice %2 {offsets = [2, 0], sizes = [1, 32], strides = [1, 1]} : vector<8x128xf32> to vector<1x32xf32>
    %6 = vector.extract_strided_slice %2 {offsets = [3, 0], sizes = [1, 32], strides = [1, 1]} : vector<8x128xf32> to vector<1x32xf32>
    %7 = vector.extract_strided_slice %2 {offsets = [4, 0], sizes = [1, 96], strides = [1, 1]} : vector<8x128xf32> to vector<1x96xf32>
    %8 = vector.extract_strided_slice %2 {offsets = [5, 0], sizes = [1, 32], strides = [1, 1]} : vector<8x128xf32> to vector<1x32xf32>
    %9 = vector.extract_strided_slice %2 {offsets = [6, 0], sizes = [1, 128], strides = [1, 1]} : vector<8x128xf32> to vector<1x128xf32>
    %10 = vector.extract_strided_slice %2 {offsets = [7, 0], sizes = [1, 32], strides = [1, 1]} : vector<8x128xf32> to vector<1x32xf32>
    %cst = arith.constant dense<0.000000e+00> : vector<16xf32>
    %11 = vector.multi_reduction <add>, %0, %cst [1] : vector<16x32xf32> to vector<16xf32>
    %12 = vector.shape_cast %11 : vector<16xf32> to vector<16x1xf32>
    %cst_5 = arith.constant 3.200000e+01 : f32
    %13 = vector.broadcast %cst_5 : f32 to vector<16x1xf32>
    %14 = arith.divf %12, %13 : vector<16x1xf32>
    %15 = vector.broadcast %14 : vector<16x1xf32> to vector<16x32xf32>
    %16 = arith.subf %0, %15 : vector<16x32xf32>
    %17 = arith.mulf %16, %16 : vector<16x32xf32>
    %cst_6 = arith.constant dense<0.000000e+00> : vector<16xf32>
    %18 = vector.multi_reduction <add>, %17, %cst_6 [1] : vector<16x32xf32> to vector<16xf32>
    %19 = vector.shape_cast %18 : vector<16xf32> to vector<16x1xf32>
    %cst_7 = arith.constant 3.200000e+01 : f32
    %20 = vector.broadcast %cst_7 : f32 to vector<16x1xf32>
    %21 = arith.divf %19, %20 : vector<16x1xf32>
    %22 = vector.broadcast %14 : vector<16x1xf32> to vector<16x32xf32>
    %23 = arith.subf %0, %22 : vector<16x32xf32>
    %cst_8 = arith.constant 9.99999974E-6 : f32
    %24 = vector.broadcast %cst_8 : f32 to vector<16x1xf32>
    %25 = arith.addf %21, %24 : vector<16x1xf32>
    %26 = math.rsqrt %25 : vector<16x1xf32>
    %27 = vector.broadcast %26 : vector<16x1xf32> to vector<16x32xf32>
    %28 = arith.mulf %23, %27 : vector<16x32xf32>
    %29 = vector.broadcast %3 : vector<1x32xf32> to vector<16x32xf32>
    %30 = arith.mulf %28, %29 : vector<16x32xf32>
    %31 = vector.broadcast %4 : vector<1x32xf32> to vector<16x32xf32>
    %32 = arith.addf %30, %31 : vector<16x32xf32>
    %33 = arith.truncf %32 : vector<16x32xf32> to vector<16x32xbf16>
    %c0_9 = arith.constant 0 : index
    %c0_10 = arith.constant 0 : index
    %34 = vector.load %arg2[%c0_9, %c0_10] : memref<32x96xbf16, #tpu.memory_space<vmem>>, vector<32x96xbf16>
    %cst_11 = arith.constant dense<0.000000e+00> : vector<16x96xf32>
    %35 = tpu.matmul %33, %34, %cst_11 {dimension_numbers = #tpu.dot_dimension_numbers<[1], [0], [0], [1], [0, 0, 1, 1], [], []>} : vector<16x32xbf16>, vector<32x96xbf16>, vector<16x96xf32> -> vector<16x96xf32>
    %36 = vector.broadcast %7 : vector<1x96xf32> to vector<16x96xf32>
    %37 = arith.addf %35, %36 : vector<16x96xf32>
    %38 = vector.extract_strided_slice %37 {offsets = [0, 0], sizes = [16, 8], strides = [1, 1]} : vector<16x96xf32> to vector<16x8xf32>
    %39 = arith.truncf %38 : vector<16x8xf32> to vector<16x8xbf16>
    %40 = vector.extract_strided_slice %37 {offsets = [0, 32], sizes = [16, 8], strides = [1, 1]} : vector<16x96xf32> to vector<16x8xf32>
    %41 = arith.truncf %40 : vector<16x8xf32> to vector<16x8xbf16>
    %42 = vector.extract_strided_slice %37 {offsets = [0, 64], sizes = [16, 8], strides = [1, 1]} : vector<16x96xf32> to vector<16x8xf32>
    %43 = arith.truncf %42 : vector<16x8xf32> to vector<16x8xbf16>
    %cst_12 = arith.constant dense<0.000000e+00> : vector<16x16xf32>
    %44 = tpu.matmul %39, %41, %cst_12 {dimension_numbers = #tpu.dot_dimension_numbers<[1], [1], [0], [0], [0, 0, 1, 0], [], []>} : vector<16x8xbf16>, vector<16x8xbf16>, vector<16x16xf32> -> vector<16x16xf32>
    %45 = arith.addf %44, %1 : vector<16x16xf32>
    %cst_13 = arith.constant dense<0xFF800000> : vector<16xf32>
    %46 = vector.multi_reduction <maximumf>, %45, %cst_13 [1] : vector<16x16xf32> to vector<16xf32>
    %47 = vector.shape_cast %46 : vector<16xf32> to vector<16x1xf32>
    %48 = vector.broadcast %47 : vector<16x1xf32> to vector<16x16xf32>
    %49 = arith.subf %45, %48 : vector<16x16xf32>
    %50 = math.exp %49 : vector<16x16xf32>
    %cst_14 = arith.constant dense<0.000000e+00> : vector<16xf32>
    %51 = vector.multi_reduction <add>, %50, %cst_14 [1] : vector<16x16xf32> to vector<16xf32>
    %52 = vector.shape_cast %51 : vector<16xf32> to vector<16x1xf32>
    %53 = arith.truncf %50 : vector<16x16xf32> to vector<16x16xbf16>
    %cst_15 = arith.constant dense<0.000000e+00> : vector<16x8xf32>
    %54 = tpu.matmul %53, %43, %cst_15 {dimension_numbers = #tpu.dot_dimension_numbers<[1], [0], [0], [1], [0, 0, 1, 1], [], []>} : vector<16x16xbf16>, vector<16x8xbf16>, vector<16x8xf32> -> vector<16x8xf32>
    %55 = tpu.reciprocal %52 {approx = true} : vector<16x1xf32> -> vector<16x1xf32>
    %56 = vector.broadcast %55 : vector<16x1xf32> to vector<16x8xf32>
    %57 = arith.mulf %54, %56 : vector<16x8xf32>
    %58 = vector.extract_strided_slice %37 {offsets = [0, 8], sizes = [16, 8], strides = [1, 1]} : vector<16x96xf32> to vector<16x8xf32>
    %59 = arith.truncf %58 : vector<16x8xf32> to vector<16x8xbf16>
    %60 = vector.extract_strided_slice %37 {offsets = [0, 40], sizes = [16, 8], strides = [1, 1]} : vector<16x96xf32> to vector<16x8xf32>
    %61 = arith.truncf %60 : vector<16x8xf32> to vector<16x8xbf16>
    %62 = vector.extract_strided_slice %37 {offsets = [0, 72], sizes = [16, 8], strides = [1, 1]} : vector<16x96xf32> to vector<16x8xf32>
    %63 = arith.truncf %62 : vector<16x8xf32> to vector<16x8xbf16>
    %cst_16 = arith.constant dense<0.000000e+00> : vector<16x16xf32>
    %64 = tpu.matmul %59, %61, %cst_16 {dimension_numbers = #tpu.dot_dimension_numbers<[1], [1], [0], [0], [0, 0, 1, 0], [], []>} : vector<16x8xbf16>, vector<16x8xbf16>, vector<16x16xf32> -> vector<16x16xf32>
    %65 = arith.addf %64, %1 : vector<16x16xf32>
    %cst_17 = arith.constant dense<0xFF800000> : vector<16xf32>
    %66 = vector.multi_reduction <maximumf>, %65, %cst_17 [1] : vector<16x16xf32> to vector<16xf32>
    %67 = vector.shape_cast %66 : vector<16xf32> to vector<16x1xf32>
    %68 = vector.broadcast %67 : vector<16x1xf32> to vector<16x16xf32>
    %69 = arith.subf %65, %68 : vector<16x16xf32>
    %70 = math.exp %69 : vector<16x16xf32>
    %cst_18 = arith.constant dense<0.000000e+00> : vector<16xf32>
    %71 = vector.multi_reduction <add>, %70, %cst_18 [1] : vector<16x16xf32> to vector<16xf32>
    %72 = vector.shape_cast %71 : vector<16xf32> to vector<16x1xf32>
    %73 = arith.truncf %70 : vector<16x16xf32> to vector<16x16xbf16>
    %cst_19 = arith.constant dense<0.000000e+00> : vector<16x8xf32>
    %74 = tpu.matmul %73, %63, %cst_19 {dimension_numbers = #tpu.dot_dimension_numbers<[1], [0], [0], [1], [0, 0, 1, 1], [], []>} : vector<16x16xbf16>, vector<16x8xbf16>, vector<16x8xf32> -> vector<16x8xf32>
    %75 = tpu.reciprocal %72 {approx = true} : vector<16x1xf32> -> vector<16x1xf32>
    %76 = vector.broadcast %75 : vector<16x1xf32> to vector<16x8xf32>
    %77 = arith.mulf %74, %76 : vector<16x8xf32>
    %78 = vector.extract_strided_slice %37 {offsets = [0, 16], sizes = [16, 8], strides = [1, 1]} : vector<16x96xf32> to vector<16x8xf32>
    %79 = arith.truncf %78 : vector<16x8xf32> to vector<16x8xbf16>
    %80 = vector.extract_strided_slice %37 {offsets = [0, 48], sizes = [16, 8], strides = [1, 1]} : vector<16x96xf32> to vector<16x8xf32>
    %81 = arith.truncf %80 : vector<16x8xf32> to vector<16x8xbf16>
    %82 = vector.extract_strided_slice %37 {offsets = [0, 80], sizes = [16, 8], strides = [1, 1]} : vector<16x96xf32> to vector<16x8xf32>
    %83 = arith.truncf %82 : vector<16x8xf32> to vector<16x8xbf16>
    %cst_20 = arith.constant dense<0.000000e+00> : vector<16x16xf32>
    %84 = tpu.matmul %79, %81, %cst_20 {dimension_numbers = #tpu.dot_dimension_numbers<[1], [1], [0], [0], [0, 0, 1, 0], [], []>} : vector<16x8xbf16>, vector<16x8xbf16>, vector<16x16xf32> -> vector<16x16xf32>
    %85 = arith.addf %84, %1 : vector<16x16xf32>
    %cst_21 = arith.constant dense<0xFF800000> : vector<16xf32>
    %86 = vector.multi_reduction <maximumf>, %85, %cst_21 [1] : vector<16x16xf32> to vector<16xf32>
    %87 = vector.shape_cast %86 : vector<16xf32> to vector<16x1xf32>
    %88 = vector.broadcast %87 : vector<16x1xf32> to vector<16x16xf32>
    %89 = arith.subf %85, %88 : vector<16x16xf32>
    %90 = math.exp %89 : vector<16x16xf32>
    %cst_22 = arith.constant dense<0.000000e+00> : vector<16xf32>
    %91 = vector.multi_reduction <add>, %90, %cst_22 [1] : vector<16x16xf32> to vector<16xf32>
    %92 = vector.shape_cast %91 : vector<16xf32> to vector<16x1xf32>
    %93 = arith.truncf %90 : vector<16x16xf32> to vector<16x16xbf16>
    %cst_23 = arith.constant dense<0.000000e+00> : vector<16x8xf32>
    %94 = tpu.matmul %93, %83, %cst_23 {dimension_numbers = #tpu.dot_dimension_numbers<[1], [0], [0], [1], [0, 0, 1, 1], [], []>} : vector<16x16xbf16>, vector<16x8xbf16>, vector<16x8xf32> -> vector<16x8xf32>
    %95 = tpu.reciprocal %92 {approx = true} : vector<16x1xf32> -> vector<16x1xf32>
    %96 = vector.broadcast %95 : vector<16x1xf32> to vector<16x8xf32>
    %97 = arith.mulf %94, %96 : vector<16x8xf32>
    %98 = vector.extract_strided_slice %37 {offsets = [0, 24], sizes = [16, 8], strides = [1, 1]} : vector<16x96xf32> to vector<16x8xf32>
    %99 = arith.truncf %98 : vector<16x8xf32> to vector<16x8xbf16>
    %100 = vector.extract_strided_slice %37 {offsets = [0, 56], sizes = [16, 8], strides = [1, 1]} : vector<16x96xf32> to vector<16x8xf32>
    %101 = arith.truncf %100 : vector<16x8xf32> to vector<16x8xbf16>
    %102 = vector.extract_strided_slice %37 {offsets = [0, 88], sizes = [16, 8], strides = [1, 1]} : vector<16x96xf32> to vector<16x8xf32>
    %103 = arith.truncf %102 : vector<16x8xf32> to vector<16x8xbf16>
    %cst_24 = arith.constant dense<0.000000e+00> : vector<16x16xf32>
    %104 = tpu.matmul %99, %101, %cst_24 {dimension_numbers = #tpu.dot_dimension_numbers<[1], [1], [0], [0], [0, 0, 1, 0], [], []>} : vector<16x8xbf16>, vector<16x8xbf16>, vector<16x16xf32> -> vector<16x16xf32>
    %105 = arith.addf %104, %1 : vector<16x16xf32>
    %cst_25 = arith.constant dense<0xFF800000> : vector<16xf32>
    %106 = vector.multi_reduction <maximumf>, %105, %cst_25 [1] : vector<16x16xf32> to vector<16xf32>
    %107 = vector.shape_cast %106 : vector<16xf32> to vector<16x1xf32>
    %108 = vector.broadcast %107 : vector<16x1xf32> to vector<16x16xf32>
    %109 = arith.subf %105, %108 : vector<16x16xf32>
    %110 = math.exp %109 : vector<16x16xf32>
    %cst_26 = arith.constant dense<0.000000e+00> : vector<16xf32>
    %111 = vector.multi_reduction <add>, %110, %cst_26 [1] : vector<16x16xf32> to vector<16xf32>
    %112 = vector.shape_cast %111 : vector<16xf32> to vector<16x1xf32>
    %113 = arith.truncf %110 : vector<16x16xf32> to vector<16x16xbf16>
    %cst_27 = arith.constant dense<0.000000e+00> : vector<16x8xf32>
    %114 = tpu.matmul %113, %103, %cst_27 {dimension_numbers = #tpu.dot_dimension_numbers<[1], [0], [0], [1], [0, 0, 1, 1], [], []>} : vector<16x16xbf16>, vector<16x8xbf16>, vector<16x8xf32> -> vector<16x8xf32>
    %115 = tpu.reciprocal %112 {approx = true} : vector<16x1xf32> -> vector<16x1xf32>
    %116 = vector.broadcast %115 : vector<16x1xf32> to vector<16x8xf32>
    %117 = arith.mulf %114, %116 : vector<16x8xf32>
    %118 = tpu.concatenate %57, %77, %97, %117 in 1 : vector<16x8xf32>, vector<16x8xf32>, vector<16x8xf32>, vector<16x8xf32> -> vector<16x32xf32>
    %119 = arith.truncf %118 : vector<16x32xf32> to vector<16x32xbf16>
    %c0_28 = arith.constant 0 : index
    %c0_29 = arith.constant 0 : index
    %120 = vector.load %arg3[%c0_28, %c0_29] : memref<32x32xbf16, #tpu.memory_space<vmem>>, vector<32x32xbf16>
    %cst_30 = arith.constant dense<0.000000e+00> : vector<16x32xf32>
    %121 = tpu.matmul %119, %120, %cst_30 {dimension_numbers = #tpu.dot_dimension_numbers<[1], [0], [0], [1], [0, 0, 1, 1], [], []>} : vector<16x32xbf16>, vector<32x32xbf16>, vector<16x32xf32> -> vector<16x32xf32>
    %122 = vector.broadcast %8 : vector<1x32xf32> to vector<16x32xf32>
    %123 = arith.addf %121, %122 : vector<16x32xf32>
    %124 = arith.addf %0, %123 : vector<16x32xf32>
    %cst_31 = arith.constant dense<0.000000e+00> : vector<16xf32>
    %125 = vector.multi_reduction <add>, %124, %cst_31 [1] : vector<16x32xf32> to vector<16xf32>
    %126 = vector.shape_cast %125 : vector<16xf32> to vector<16x1xf32>
    %cst_32 = arith.constant 3.200000e+01 : f32
    %127 = vector.broadcast %cst_32 : f32 to vector<16x1xf32>
    %128 = arith.divf %126, %127 : vector<16x1xf32>
    %129 = vector.broadcast %128 : vector<16x1xf32> to vector<16x32xf32>
    %130 = arith.subf %124, %129 : vector<16x32xf32>
    %131 = arith.mulf %130, %130 : vector<16x32xf32>
    %cst_33 = arith.constant dense<0.000000e+00> : vector<16xf32>
    %132 = vector.multi_reduction <add>, %131, %cst_33 [1] : vector<16x32xf32> to vector<16xf32>
    %133 = vector.shape_cast %132 : vector<16xf32> to vector<16x1xf32>
    %cst_34 = arith.constant 3.200000e+01 : f32
    %134 = vector.broadcast %cst_34 : f32 to vector<16x1xf32>
    %135 = arith.divf %133, %134 : vector<16x1xf32>
    %136 = vector.broadcast %128 : vector<16x1xf32> to vector<16x32xf32>
    %137 = arith.subf %124, %136 : vector<16x32xf32>
    %cst_35 = arith.constant 9.99999974E-6 : f32
    %138 = vector.broadcast %cst_35 : f32 to vector<16x1xf32>
    %139 = arith.addf %135, %138 : vector<16x1xf32>
    %140 = math.rsqrt %139 : vector<16x1xf32>
    %141 = vector.broadcast %140 : vector<16x1xf32> to vector<16x32xf32>
    %142 = arith.mulf %137, %141 : vector<16x32xf32>
    %143 = vector.broadcast %5 : vector<1x32xf32> to vector<16x32xf32>
    %144 = arith.mulf %142, %143 : vector<16x32xf32>
    %145 = vector.broadcast %6 : vector<1x32xf32> to vector<16x32xf32>
    %146 = arith.addf %144, %145 : vector<16x32xf32>
    %147 = arith.truncf %146 : vector<16x32xf32> to vector<16x32xbf16>
    %c0_36 = arith.constant 0 : index
    %c0_37 = arith.constant 0 : index
    %148 = vector.load %arg4[%c0_36, %c0_37] : memref<32x128xbf16, #tpu.memory_space<vmem>>, vector<32x128xbf16>
    %cst_38 = arith.constant dense<0.000000e+00> : vector<16x128xf32>
    %149 = tpu.matmul %147, %148, %cst_38 {dimension_numbers = #tpu.dot_dimension_numbers<[1], [0], [0], [1], [0, 0, 1, 1], [], []>} : vector<16x32xbf16>, vector<32x128xbf16>, vector<16x128xf32> -> vector<16x128xf32>
    %150 = vector.broadcast %9 : vector<1x128xf32> to vector<16x128xf32>
    %151 = arith.addf %149, %150 : vector<16x128xf32>
    %cst_39 = arith.constant 5.000000e-01 : f32
    %152 = vector.broadcast %cst_39 : f32 to vector<16x128xf32>
    %153 = arith.mulf %152, %151 : vector<16x128xf32>
    %cst_40 = arith.constant 1.41421354 : f32
    %154 = vector.broadcast %cst_40 : f32 to vector<16x128xf32>
    %155 = arith.divf %151, %154 : vector<16x128xf32>
    %156 = math.erf %155 : vector<16x128xf32>
    %cst_41 = arith.constant 1.000000e+00 : f32
    %157 = vector.broadcast %cst_41 : f32 to vector<16x128xf32>
    %158 = arith.addf %157, %156 : vector<16x128xf32>
    %159 = arith.mulf %153, %158 : vector<16x128xf32>
    %160 = arith.truncf %159 : vector<16x128xf32> to vector<16x128xbf16>
    %c0_42 = arith.constant 0 : index
    %c0_43 = arith.constant 0 : index
    %161 = vector.load %arg5[%c0_42, %c0_43] : memref<128x32xbf16, #tpu.memory_space<vmem>>, vector<128x32xbf16>
    %cst_44 = arith.constant dense<0.000000e+00> : vector<16x32xf32>
    %162 = tpu.matmul %160, %161, %cst_44 {dimension_numbers = #tpu.dot_dimension_numbers<[1], [0], [0], [1], [0, 0, 1, 1], [], []>} : vector<16x128xbf16>, vector<128x32xbf16>, vector<16x32xf32> -> vector<16x32xf32>
    %163 = vector.broadcast %10 : vector<1x32xf32> to vector<16x32xf32>
    %164 = arith.addf %162, %163 : vector<16x32xf32>
    %165 = arith.addf %124, %164 : vector<16x32xf32>
    %c0_45 = arith.constant 0 : index
    %c0_46 = arith.constant 0 : index
    %166 = vector.load %arg7[%c0_45, %c0_46] : memref<16x32xf32, #tpu.memory_space<vmem>>, vector<16x32xf32>
    tpu.vector_store %arg7[%c0_45, %c0_46], %165 {strides = array<i32>} : memref<16x32xf32, #tpu.memory_space<vmem>>, vector<16x32xf32>,
    return
  }
}

</mosaic_0001>

<llo_original>
// kernel: tpu_custom_call.1
$region0: #{tpu_custom_call.1}
  #allocation0 [shape = 'u32[]', space=smem, size = 0x4, offset = 0x4, fixed_abs, tag = 'smem constant byte address 0x4 - core index']
  #allocation1 [shape = 'u32[144,128]{1,0:T(1,128)}', space=vmem, size = 0x12000, scoped, tag = 'internal scratch']
  %s0 = inlined_call_operand.vmem [shape: f32[16,32], index: 0, kind: input, shape index: {}]
  %s1 = inlined_call_operand.vmem [shape: f32[16,16], index: 1, kind: input, shape index: {}]
  %s2 = inlined_call_operand.vmem [shape: bf16[32,96], index: 2, kind: input, shape index: {}]
  %s3 = inlined_call_operand.vmem [shape: bf16[32,32], index: 3, kind: input, shape index: {}]
  %s4 = inlined_call_operand.vmem [shape: bf16[32,128], index: 4, kind: input, shape index: {}]
  %s5 = inlined_call_operand.vmem [shape: bf16[128,32], index: 5, kind: input, shape index: {}]
  %s6 = inlined_call_operand.vmem [shape: f32[8,128], index: 6, kind: input, shape index: {}]
  %s7 = inlined_call_operand.hbm [shape: f32[16,32], index: 7, kind: output, shape index: {}]
  %s8 = sld [smem:[#allocation0]]
  $region38: #{tpu_custom_call.1} parent=0
    _
  %s10 = ssub.s32 1, %s8
  %s11 = scalar_select 0, %s10, %s8
  $region1: #{tpu_custom_call.1} parent=0
    #allocation2 [shape = 'u8[8192]{0}', space=vmem, size = 0x2000, scoped, tag = 'output window, operand 0, single buffered']
    #allocation3 [shape = 's32[1]{0}', space=sflag, size = 0x4, scoped, tag = 'scoped memory for tpu_custom_call.1']
    %12 = vsyncpa [#allocation3], 0
    // Predicated region
    $region2: #{tpu_custom_call.1} parent=1 // pred_check
      _
    $region3: #{tpu_custom_call.1} parent=1 // pred_check_branch
      %14 = sbr.rel (0) target = $region5
    $region4: #{tpu_custom_call.1} parent=1 // pred_region
      _
    $region5: #{tpu_custom_call.1} parent=1 // pred_fallthru
      _
    // Predicated region
    $region6: #{tpu_custom_call.1} parent=1 // pred_check
      _
    $region7: #{tpu_custom_call.1} parent=1 // pred_check_branch
      %16 = sbr.rel (0) target = $region9
    $region8: #{tpu_custom_call.1} parent=1 // pred_region
      _
    $region9: #{tpu_custom_call.1} parent=1 // pred_fallthru
      _
    // Predicated region
    $region10: #{tpu_custom_call.1} parent=1 // pred_check
      _
    $region11: #{tpu_custom_call.1} parent=1 // pred_check_branch
      %18 = sbr.rel (0) target = $region13
    $region12: #{tpu_custom_call.1} parent=1 // pred_region
      _
    $region13: #{tpu_custom_call.1} parent=1 // pred_fallthru
      _
    // Predicated region
    $region14: #{tpu_custom_call.1} parent=1 // pred_check
      _
    $region15: #{tpu_custom_call.1} parent=1 // pred_check_branch
      %20 = sbr.rel (0) target = $region17
    $region16: #{tpu_custom_call.1} parent=1 // pred_region
      _
    $region17: #{tpu_custom_call.1} parent=1 // pred_fallthru
      _
    // Predicated region
    $region18: #{tpu_custom_call.1} parent=1 // pred_check
      _
    $region19: #{tpu_custom_call.1} parent=1 // pred_check_branch
      %22 = sbr.rel (0) target = $region21
    $region20: #{tpu_custom_call.1} parent=1 // pred_region
      _
    $region21: #{tpu_custom_call.1} parent=1 // pred_fallthru
      _
    // Predicated region
    $region22: #{tpu_custom_call.1} parent=1 // pred_check
      _
    $region23: #{tpu_custom_call.1} parent=1 // pred_check_branch
      %24 = sbr.rel (0) target = $region25
    $region24: #{tpu_custom_call.1} parent=1 // pred_region
      _
    $region25: #{tpu_custom_call.1} parent=1 // pred_fallthru
      _
    // Predicated region
    $region26: #{tpu_custom_call.1} parent=1 // pred_check
      _
    $region27: #{tpu_custom_call.1} parent=1 // pred_check_branch
      %26 = sbr.rel (0) target = $region29
    $region28: #{tpu_custom_call.1} parent=1 // pred_region
      _
    $region29: #{tpu_custom_call.1} parent=1 // pred_fallthru
      _
    %v28 = vld [vmem:[%s0] sm:$0xff]
    %v29 = vld [vmem:[%s0 + $0x8] sm:$0xff]
    %v30 = vld [vmem:[%s1] sm:$0xff]
    %v31 = vld [vmem:[%s1 + $0x8] sm:$0xff]
    %v32 = vld [vmem:[%s6] sm:$0xff]
    %vm33 = vcmask 261120
    %v34 = vsel %vm33, %v28, 0.0
    %35 = vadd.xlane.f32.xlu0 %v34
    %v36 = vpop.xlane.xlu0 %35
    %v37 = vsel %vm33, %v29, 0.0
    %38 = vadd.xlane.f32.xlu0 %v37
    %v39 = vpop.xlane.xlu0 %38
    %v40 = vrcp.pop 32.0
    %v41 = vmul.f32 %v36, %v40
    %v42 = vmul.f32 %v39, %v40
    %v43 = vsub.f32 %v28, %v41
    %v44 = vsub.f32 %v29, %v42
    %v45 = vmul.f32 %v43, %v43
    %v46 = vmul.f32 %v44, %v44
    %v47 = vsel %vm33, %v45, 0.0
    %48 = vadd.xlane.f32.xlu0 %v47
    %v49 = vpop.xlane.xlu0 %48
    %v50 = vsel %vm33, %v46, 0.0
    %51 = vadd.xlane.f32.xlu0 %v50
    %v52 = vpop.xlane.xlu0 %51
    %v53 = vmul.f32 %v49, %v40
    %v54 = vmul.f32 %v52, %v40
    %v55 = vadd.f32 %v53, 1e-05
    %v56 = vadd.f32 %v54, 1e-05
    %v57 = vrsqrt.pop %v55
    %v58 = vrsqrt.pop %v56
    %v59 = vmul.f32 %v43, %v57
    %v60 = vmul.f32 %v44, %v58
    %v61 = vlaneseq
    %v62 = vshrl.u32 %v61, 7
    %v63 = vsub.s32 0, %v62
    %v64 = vrot.slane %v32, %v63
    %v65 = vmul.f32 %v59, %v64
    %v66 = vmul.f32 %v60, %v64
    %v67 = vlaneseq
    %v68 = vshrl.u32 %v67, 7
    %v69 = vsub.s32 1, %v68
    %v70 = vrot.slane %v32, %v69
    %v71 = vadd.f32 %v65, %v70
    %v72 = vadd.f32 %v66, %v70
    %v73 = vpack.c.bf16 %v72, %v71
    %v74 = vld [vmem:[%s2] sm:$0xf]
    %v75 = vld [vmem:[%s2 + $0x4] sm:$0xf]
    %v76 = vld [vmem:[%s2 + $0x8] sm:$0xf]
    %v77 = vld [vmem:[%s2 + $0xc] sm:$0xf]
    %v78 = vlaneseq
    %v79 = vshrl.u32 %v78, 7
    %v80 = vsub.s32 4, %v79
    %v81 = vrot.slane %v32, %v80
    %v86 = vunpack.c.l.b16 %v74
    %v87 = vunpack.c.l.b16 %v75
    %v88 = vunpack.c.l.b16 %v76
    %v89 = vunpack.c.l.b16 %v77
    %v90 = vpack.c.b16 %v87, %v86
    %v91 = vpack.c.b16 %v89, %v88
    %v95 = vsel %vm33, %v73, 0
    %97 = vmatprep.subr.bf16.mxu0 0
    %98 = vmatpush1.bf16.msra.mxu0 0
    %99 = vmatprep.subr.bf16.mxu0 0
    %100 = vmatpush1.bf16.msra.mxu0 0
    %101 = vmatprep.subr.bf16.mxu0 0
    %102 = vmatpush1.bf16.msra.mxu0 0
    %103 = vmatprep.subr.bf16.mxu0 0
    %104 = vmatpush1.bf16.msra.mxu0 0
    %105 = vmatprep.subr.bf16.mxu0 0
    %106 = vmatpush1.bf16.msra.mxu0 0
    %107 = vmatprep.subr.bf16.mxu0 0
    %108 = vmatpush1.bf16.msra.mxu0 0
    %109 = vmatprep.subr.bf16.mxu0 0
    %110 = vmatpush1.bf16.msra.mxu0 %v91
    %111 = vmatprep.subr.bf16.mxu0 0
    %112 = vmatpush1.bf16.msra.mxu0 %v90
    %113 = vmatprep.subr.bf16.mxu0 0
    %114 = vmatpush2.bf16.msra.mxu0 0
    %115 = vmatprep.subr.bf16.mxu0 0
    %116 = vmatpush2.bf16.msra.mxu0 0
    %117 = vmatprep.subr.bf16.mxu0 0
    %118 = vmatpush2.bf16.msra.mxu0 0
    %119 = vmatprep.subr.bf16.mxu0 0
    %120 = vmatpush2.bf16.msra.mxu0 0
    %121 = vmatprep.subr.bf16.mxu0 0
    %122 = vmatpush2.bf16.msra.mxu0 0
    %123 = vmatprep.subr.bf16.mxu0 0
    %124 = vmatpush2.bf16.msra.mxu0 0
    %125 = vmatprep.subr.bf16.mxu0 0
    %126 = vmatpush2.bf16.msra.mxu0 0
    %127 = vmatprep.subr.bf16.mxu0 0
    %128 = vmatpush2.bf16.msra.mxu0 0
    %129 = vmatprep.mubr.bf16.mxu0 0
    %130 = vmatmul.mubr.bf16.gmra.mxu0 %v95
    %v131 = vpop.f32.mrf.mxu0
    %v132 = vadd.f32 %v81, %v131
    %v133 = vpop.f32.mrf.mxu0
    %v134 = vpop.f32.mrf.mxu0
    %v135 = vadd.f32 %v81, %v134
    %v136 = vpop.f32.mrf.mxu0
    %137 = vdwg.mxu0
    %v138 = vpack.c.bf16 %v135, %v132
    %140 = vrot.lane.b32.xlu0 %v138, 96
    %v141 = vpop.permute.xlu0 %140
    %vm142 = vcmask 64512
    %v144 = vsel %vm142, %v138, 0
    %v147 = vsel %vm142, %v141, 0
    %149 = vmatprep.subr.bf16.mxu0 0
    %150 = vmatpush1.bf16.xpose.msra.mxu0 0
    %151 = vmatprep.subr.bf16.mxu0 0
    %152 = vmatpush1.bf16.xpose.msra.mxu0 0
    %153 = vmatprep.subr.bf16.mxu0 0
    %154 = vmatpush1.bf16.xpose.msra.mxu0 0
    %155 = vmatprep.subr.bf16.mxu0 0
    %156 = vmatpush1.bf16.xpose.msra.mxu0 0
    %157 = vmatprep.subr.bf16.mxu0 0
    %158 = vmatpush1.bf16.xpose.msra.mxu0 0
    %159 = vmatprep.subr.bf16.mxu0 0
    %160 = vmatpush1.bf16.xpose.msra.mxu0 0
    %161 = vmatprep.subr.bf16.mxu0 0
    %162 = vmatpush1.bf16.xpose.msra.mxu0 0
    %163 = vmatprep.subr.bf16.mxu0 0
    %164 = vmatpush1.bf16.xpose.msra.mxu0 %v147
    %165 = vmatprep.subr.bf16.mxu0 0
    %166 = vmatpush2.bf16.xpose.msra.mxu0 0
    %167 = vmatprep.subr.bf16.mxu0 0
    %168 = vmatpush2.bf16.xpose.msra.mxu0 0
    %169 = vmatprep.subr.bf16.mxu0 0
    %170 = vmatpush2.bf16.xpose.msra.mxu0 0
    %171 = vmatprep.subr.bf16.mxu0 0
    %172 = vmatpush2.bf16.xpose.msra.mxu0 0
    %173 = vmatprep.subr.bf16.mxu0 0
    %174 = vmatpush2.bf16.xpose.msra.mxu0 0
    %175 = vmatprep.subr.bf16.mxu0 0
    %176 = vmatpush2.bf16.xpose.msra.mxu0 0
    %177 = vmatprep.subr.bf16.mxu0 0
    %178 = vmatpush2.bf16.xpose.msra.mxu0 0
    %179 = vmatprep.subr.bf16.mxu0 0
    %180 = vmatpush2.bf16.xpose.msra.mxu0 0
    %181 = vmatprep.mubr.bf16.mxu0 0
    %182 = vmatmul.mubr.bf16.gmra.mxu0 %v144
    %v183 = vpop.f32.mrf.mxu0
    %v184 = vadd.f32 %v30, %v183
    %v185 = vpop.f32.mrf.mxu0
    %v186 = vpop.f32.mrf.mxu0
    %v187 = vadd.f32 %v31, %v186
    %v188 = vpop.f32.mrf.mxu0
    %189 = vdwg.mxu0
    %vm190 = vcmask 130048
    %v191 = vsel %vm190, %v184, -inf
    %192 = vmax.xlane.f32.xlu0 %v191
    %v193 = vpop.xlane.xlu0 %192
    %v194 = vsel %vm190, %v187, -inf
    %195 = vmax.xlane.f32.xlu0 %v194
    %v196 = vpop.xlane.xlu0 %195
    %v197 = vsub.f32 %v184, %v193
    %v198 = vsub.f32 %v187, %v196
    %v199 = vmul.f32 %v197, 1.442695
    %v200 = vpow.pop %v199
    %v201 = vmul.f32 %v198, 1.442695
    %v202 = vpow.pop %v201
    %v203 = vsel %vm190, %v200, 0.0
    %204 = vadd.xlane.f32.xlu0 %v203
    %v205 = vpop.xlane.xlu0 %204
    %v206 = vsel %vm190, %v202, 0.0
    %207 = vadd.xlane.f32.xlu0 %v206
    %v208 = vpop.xlane.xlu0 %207
    %v209 = vpack.c.bf16 %v202, %v200
    %210 = vrot.lane.b32.xlu0 %v138, 64
    %v211 = vpop.permute.xlu0 %210
    %v214 = vsel %vm190, %v209, 0
    %216 = vmatprep.subr.bf16.mxu0 0
    %217 = vmatpush1.bf16.msra.mxu0 0
    %218 = vmatprep.subr.bf16.mxu0 0
    %219 = vmatpush1.bf16.msra.mxu0 0
    %220 = vmatprep.subr.bf16.mxu0 0
    %221 = vmatpush1.bf16.msra.mxu0 0
    %222 = vmatprep.subr.bf16.mxu0 0
    %223 = vmatpush1.bf16.msra.mxu0 0
    %224 = vmatprep.subr.bf16.mxu0 0
    %225 = vmatpush1.bf16.msra.mxu0 0
    %226 = vmatprep.subr.bf16.mxu0 0
    %227 = vmatpush1.bf16.msra.mxu0 0
    %228 = vmatprep.subr.bf16.mxu0 0
    %229 = vmatpush1.bf16.msra.mxu0 0
    %230 = vmatprep.subr.bf16.mxu0 0
    %231 = vmatpush1.bf16.msra.mxu0 %v211
    %232 = vmatprep.subr.bf16.mxu0 0
    %233 = vmatpush2.bf16.msra.mxu0 0
    %234 = vmatprep.subr.bf16.mxu0 0
    %235 = vmatpush2.bf16.msra.mxu0 0
    %236 = vmatprep.subr.bf16.mxu0 0
    %237 = vmatpush2.bf16.msra.mxu0 0
    %238 = vmatprep.subr.bf16.mxu0 0
    %239 = vmatpush2.bf16.msra.mxu0 0
    %240 = vmatprep.subr.bf16.mxu0 0
    %241 = vmatpush2.bf16.msra.mxu0 0
    %242 = vmatprep.subr.bf16.mxu0 0
    %243 = vmatpush2.bf16.msra.mxu0 0
    %244 = vmatprep.subr.bf16.mxu0 0
    %245 = vmatpush2.bf16.msra.mxu0 0
    %246 = vmatprep.subr.bf16.mxu0 0
    %247 = vmatpush2.bf16.msra.mxu0 0
    %248 = vmatprep.mubr.bf16.mxu0 0
    %249 = vmatmul.mubr.bf16.gmra.mxu0 %v214
    %v250 = vpop.f32.mrf.mxu0
    %v251 = vadd.f32 0.0, %v250
    %v252 = vpop.f32.mrf.mxu0
    %v253 = vpop.f32.mrf.mxu0
    %v254 = vadd.f32 0.0, %v253
    %v255 = vpop.f32.mrf.mxu0
    %256 = vdwg.mxu0
    %v257 = vrcp.pop %v205
    %v258 = vrcp.pop %v208
    %v259 = vmul.f32 %v251, %v257
    %v260 = vmul.f32 %v254, %v258
    %261 = vrot.lane.b32.xlu0 %v138, 120
    %v262 = vpop.permute.xlu0 %261
    %263 = vrot.lane.b32.xlu0 %v138, 88
    %v264 = vpop.permute.xlu0 %263
    %v266 = vsel %vm142, %v262, 0
    %v269 = vsel %vm142, %v264, 0
    %271 = vmatprep.subr.bf16.mxu0 0
    %272 = vmatpush1.bf16.xpose.msra.mxu0 0
    %273 = vmatprep.subr.bf16.mxu0 0
    %274 = vmatpush1.bf16.xpose.msra.mxu0 0
    %275 = vmatprep.subr.bf16.mxu0 0
    %276 = vmatpush1.bf16.xpose.msra.mxu0 0
    %277 = vmatprep.subr.bf16.mxu0 0
    %278 = vmatpush1.bf16.xpose.msra.mxu0 0
    %279 = vmatprep.subr.bf16.mxu0 0
    %280 = vmatpush1.bf16.xpose.msra.mxu0 0
    %281 = vmatprep.subr.bf16.mxu0 0
    %282 = vmatpush1.bf16.xpose.msra.mxu0 0
    %283 = vmatprep.subr.bf16.mxu0 0
    %284 = vmatpush1.bf16.xpose.msra.mxu0 0
    %285 = vmatprep.subr.bf16.mxu0 0
    %286 = vmatpush1.bf16.xpose.msra.mxu0 %v269
    %287 = vmatprep.subr.bf16.mxu0 0
    %288 = vmatpush2.bf16.xpose.msra.mxu0 0
    %289 = vmatprep.subr.bf16.mxu0 0
    %290 = vmatpush2.bf16.xpose.msra.mxu0 0
    %291 = vmatprep.subr.bf16.mxu0 0
    %292 = vmatpush2.bf16.xpose.msra.mxu0 0
    %293 = vmatprep.subr.bf16.mxu0 0
    %294 = vmatpush2.bf16.xpose.msra.mxu0 0
    %295 = vmatprep.subr.bf16.mxu0 0
    %296 = vmatpush2.bf16.xpose.msra.mxu0 0
    %297 = vmatprep.subr.bf16.mxu0 0
    %298 = vmatpush2.bf16.xpose.msra.mxu0 0
    %299 = vmatprep.subr.bf16.mxu0 0
    %300 = vmatpush2.bf16.xpose.msra.mxu0 0
    %301 = vmatprep.subr.bf16.mxu0 0
    %302 = vmatpush2.bf16.xpose.msra.mxu0 0
    %303 = vmatprep.mubr.bf16.mxu0 0
    %304 = vmatmul.mubr.bf16.gmra.mxu0 %v266
    %v305 = vpop.f32.mrf.mxu0
    %v306 = vadd.f32 %v30, %v305
    %v307 = vpop.f32.mrf.mxu0
    %v308 = vpop.f32.mrf.mxu0
    %v309 = vadd.f32 %v31, %v308
    %v310 = vpop.f32.mrf.mxu0
    %311 = vdwg.mxu0
    %v312 = vsel %vm190, %v306, -inf
    %313 = vmax.xlane.f32.xlu0 %v312
    %v314 = vpop.xlane.xlu0 %313
    %v315 = vsel %vm190, %v309, -inf
    %316 = vmax.xlane.f32.xlu0 %v315
    %v317 = vpop.xlane.xlu0 %316
    %v318 = vsub.f32 %v306, %v314
    %v319 = vsub.f32 %v309, %v317
    %v320 = vmul.f32 %v318, 1.442695
    %v321 = vpow.pop %v320
    %v322 = vmul.f32 %v319, 1.442695
    %v323 = vpow.pop %v322
    %v324 = vsel %vm190, %v321, 0.0
    %325 = vadd.xlane.f32.xlu0 %v324
    %v326 = vpop.xlane.xlu0 %325
    %v327 = vsel %vm190, %v323, 0.0
    %328 = vadd.xlane.f32.xlu0 %v327
    %v329 = vpop.xlane.xlu0 %328
    %v330 = vpack.c.bf16 %v323, %v321
    %331 = vrot.lane.b32.xlu0 %v138, 56
    %v332 = vpop.permute.xlu0 %331
    %v335 = vsel %vm190, %v330, 0
    %337 = vmatprep.subr.bf16.mxu0 0
    %338 = vmatpush1.bf16.msra.mxu0 0
    %339 = vmatprep.subr.bf16.mxu0 0
    %340 = vmatpush1.bf16.msra.mxu0 0
    %341 = vmatprep.subr.bf16.mxu0 0
    %342 = vmatpush1.bf16.msra.mxu0 0
    %343 = vmatprep.subr.bf16.mxu0 0
    %344 = vmatpush1.bf16.msra.mxu0 0
    %345 = vmatprep.subr.bf16.mxu0 0
    %346 = vmatpush1.bf16.msra.mxu0 0
    %347 = vmatprep.subr.bf16.mxu0 0
    %348 = vmatpush1.bf16.msra.mxu0 0
    %349 = vmatprep.subr.bf16.mxu0 0
    %350 = vmatpush1.bf16.msra.mxu0 0
    %351 = vmatprep.subr.bf16.mxu0 0
    %352 = vmatpush1.bf16.msra.mxu0 %v332
    %353 = vmatprep.subr.bf16.mxu0 0
    %354 = vmatpush2.bf16.msra.mxu0 0
    %355 = vmatprep.subr.bf16.mxu0 0
    %356 = vmatpush2.bf16.msra.mxu0 0
    %357 = vmatprep.subr.bf16.mxu0 0
    %358 = vmatpush2.bf16.msra.mxu0 0
    %359 = vmatprep.subr.bf16.mxu0 0
    %360 = vmatpush2.bf16.msra.mxu0 0
    %361 = vmatprep.subr.bf16.mxu0 0
    %362 = vmatpush2.bf16.msra.mxu0 0
    %363 = vmatprep.subr.bf16.mxu0 0
    %364 = vmatpush2.bf16.msra.mxu0 0
    %365 = vmatprep.subr.bf16.mxu0 0
    %366 = vmatpush2.bf16.msra.mxu0 0
    %367 = vmatprep.subr.bf16.mxu0 0
    %368 = vmatpush2.bf16.msra.mxu0 0
    %369 = vmatprep.mubr.bf16.mxu0 0
    %370 = vmatmul.mubr.bf16.gmra.mxu0 %v335
    %v371 = vpop.f32.mrf.mxu0
    %v372 = vadd.f32 0.0, %v371
    %v373 = vpop.f32.mrf.mxu0
    %v374 = vpop.f32.mrf.mxu0
    %v375 = vadd.f32 0.0, %v374
    %v376 = vpop.f32.mrf.mxu0
    %377 = vdwg.mxu0
    %v378 = vrcp.pop %v326
    %v379 = vrcp.pop %v329
    %v380 = vmul.f32 %v372, %v378
    %v381 = vmul.f32 %v375, %v379
    %382 = vrot.lane.b32.xlu0 %v138, 112
    %v383 = vpop.permute.xlu0 %382
    %384 = vrot.lane.b32.xlu0 %v138, 80
    %v385 = vpop.permute.xlu0 %384
    %v387 = vsel %vm142, %v383, 0
    %v390 = vsel %vm142, %v385, 0
    %392 = vmatprep.subr.bf16.mxu0 0
    %393 = vmatpush1.bf16.xpose.msra.mxu0 0
    %394 = vmatprep.subr.bf16.mxu0 0
    %395 = vmatpush1.bf16.xpose.msra.mxu0 0
    %396 = vmatprep.subr.bf16.mxu0 0
    %397 = vmatpush1.bf16.xpose.msra.mxu0 0
    %398 = vmatprep.subr.bf16.mxu0 0
    %399 = vmatpush1.bf16.xpose.msra.mxu0 0
    %400 = vmatprep.subr.bf16.mxu0 0
    %401 = vmatpush1.bf16.xpose.msra.mxu0 0
    %402 = vmatprep.subr.bf16.mxu0 0
    %403 = vmatpush1.bf16.xpose.msra.mxu0 0
    %404 = vmatprep.subr.bf16.mxu0 0
    %405 = vmatpush1.bf16.xpose.msra.mxu0 0
    %406 = vmatprep.subr.bf16.mxu0 0
    %407 = vmatpush1.bf16.xpose.msra.mxu0 %v390
    %408 = vmatprep.subr.bf16.mxu0 0
    %409 = vmatpush2.bf16.xpose.msra.mxu0 0
    %410 = vmatprep.subr.bf16.mxu0 0
    %411 = vmatpush2.bf16.xpose.msra.mxu0 0
    %412 = vmatprep.subr.bf16.mxu0 0
    %413 = vmatpush2.bf16.xpose.msra.mxu0 0
    %414 = vmatprep.subr.bf16.mxu0 0
    %415 = vmatpush2.bf16.xpose.msra.mxu0 0
    %416 = vmatprep.subr.bf16.mxu0 0
    %417 = vmatpush2.bf16.xpose.msra.mxu0 0
    %418 = vmatprep.subr.bf16.mxu0 0
    %419 = vmatpush2.bf16.xpose.msra.mxu0 0
    %420 = vmatprep.subr.bf16.mxu0 0
    %421 = vmatpush2.bf16.xpose.msra.mxu0 0
    %422 = vmatprep.subr.bf16.mxu0 0
    %423 = vmatpush2.bf16.xpose.msra.mxu0 0
    %424 = vmatprep.mubr.bf16.mxu0 0
    %425 = vmatmul.mubr.bf16.gmra.mxu0 %v387
    %v426 = vpop.f32.mrf.mxu0
    %v427 = vadd.f32 %v30, %v426
    %v428 = vpop.f32.mrf.mxu0
    %v429 = vpop.f32.mrf.mxu0
    %v430 = vadd.f32 %v31, %v429
    %v431 = vpop.f32.mrf.mxu0
    %432 = vdwg.mxu0
    %v433 = vsel %vm190, %v427, -inf
    %434 = vmax.xlane.f32.xlu0 %v433
    %v435 = vpop.xlane.xlu0 %434
    %v436 = vsel %vm190, %v430, -inf
    %437 = vmax.xlane.f32.xlu0 %v436
    %v438 = vpop.xlane.xlu0 %437
    %v439 = vsub.f32 %v427, %v435
    %v440 = vsub.f32 %v430, %v438
    %v441 = vmul.f32 %v439, 1.442695
    %v442 = vpow.pop %v441
    %v443 = vmul.f32 %v440, 1.442695
    %v444 = vpow.pop %v443
    %v445 = vsel %vm190, %v442, 0.0
    %446 = vadd.xlane.f32.xlu0 %v445
    %v447 = vpop.xlane.xlu0 %446
    %v448 = vsel %vm190, %v444, 0.0
    %449 = vadd.xlane.f32.xlu0 %v448
    %v450 = vpop.xlane.xlu0 %449
    %v451 = vpack.c.bf16 %v444, %v442
    %452 = vrot.lane.b32.xlu0 %v138, 48
    %v453 = vpop.permute.xlu0 %452
    %v456 = vsel %vm190, %v451, 0
    %458 = vmatprep.subr.bf16.mxu0 0
    %459 = vmatpush1.bf16.msra.mxu0 0
    %460 = vmatprep.subr.bf16.mxu0 0
    %461 = vmatpush1.bf16.msra.mxu0 0
    %462 = vmatprep.subr.bf16.mxu0 0
    %463 = vmatpush1.bf16.msra.mxu0 0
    %464 = vmatprep.subr.bf16.mxu0 0
    %465 = vmatpush1.bf16.msra.mxu0 0
    %466 = vmatprep.subr.bf16.mxu0 0
    %467 = vmatpush1.bf16.msra.mxu0 0
    %468 = vmatprep.subr.bf16.mxu0 0
    %469 = vmatpush1.bf16.msra.mxu0 0
    %470 = vmatprep.subr.bf16.mxu0 0
    %471 = vmatpush1.bf16.msra.mxu0 0
    %472 = vmatprep.subr.bf16.mxu0 0
    %473 = vmatpush1.bf16.msra.mxu0 %v453
    %474 = vmatprep.subr.bf16.mxu0 0
    %475 = vmatpush2.bf16.msra.mxu0 0
    %476 = vmatprep.subr.bf16.mxu0 0
    %477 = vmatpush2.bf16.msra.mxu0 0
    %478 = vmatprep.subr.bf16.mxu0 0
    %479 = vmatpush2.bf16.msra.mxu0 0
    %480 = vmatprep.subr.bf16.mxu0 0
    %481 = vmatpush2.bf16.msra.mxu0 0
    %482 = vmatprep.subr.bf16.mxu0 0
    %483 = vmatpush2.bf16.msra.mxu0 0
    %484 = vmatprep.subr.bf16.mxu0 0
    %485 = vmatpush2.bf16.msra.mxu0 0
    %486 = vmatprep.subr.bf16.mxu0 0
    %487 = vmatpush2.bf16.msra.mxu0 0
    %488 = vmatprep.subr.bf16.mxu0 0
    %489 = vmatpush2.bf16.msra.mxu0 0
    %490 = vmatprep.mubr.bf16.mxu0 0
    %491 = vmatmul.mubr.bf16.gmra.mxu0 %v456
    %v492 = vpop.f32.mrf.mxu0
    %v493 = vadd.f32 0.0, %v492
    %v494 = vpop.f32.mrf.mxu0
    %v495 = vpop.f32.mrf.mxu0
    %v496 = vadd.f32 0.0, %v495
    %v497 = vpop.f32.mrf.mxu0
    %498 = vdwg.mxu0
    %v499 = vrcp.pop %v447
    %v500 = vrcp.pop %v450
    %v501 = vmul.f32 %v493, %v499
    %v502 = vmul.f32 %v496, %v500
    %503 = vrot.lane.b32.xlu0 %v138, 104
    %v504 = vpop.permute.xlu0 %503
    %505 = vrot.lane.b32.xlu0 %v138, 72
    %v506 = vpop.permute.xlu0 %505
    %v508 = vsel %vm142, %v504, 0
    %v511 = vsel %vm142, %v506, 0
    %513 = vmatprep.subr.bf16.mxu0 0
    %514 = vmatpush1.bf16.xpose.msra.mxu0 0
    %515 = vmatprep.subr.bf16.mxu0 0
    %516 = vmatpush1.bf16.xpose.msra.mxu0 0
    %517 = vmatprep.subr.bf16.mxu0 0
    %518 = vmatpush1.bf16.xpose.msra.mxu0 0
    %519 = vmatprep.subr.bf16.mxu0 0
    %520 = vmatpush1.bf16.xpose.msra.mxu0 0
    %521 = vmatprep.subr.bf16.mxu0 0
    %522 = vmatpush1.bf16.xpose.msra.mxu0 0
    %523 = vmatprep.subr.bf16.mxu0 0
    %524 = vmatpush1.bf16.xpose.msra.mxu0 0
    %525 = vmatprep.subr.bf16.mxu0 0
    %526 = vmatpush1.bf16.xpose.msra.mxu0 0
    %527 = vmatprep.subr.bf16.mxu0 0
    %528 = vmatpush1.bf16.xpose.msra.mxu0 %v511
    %529 = vmatprep.subr.bf16.mxu0 0
    %530 = vmatpush2.bf16.xpose.msra.mxu0 0
    %531 = vmatprep.subr.bf16.mxu0 0
    %532 = vmatpush2.bf16.xpose.msra.mxu0 0
    %533 = vmatprep.subr.bf16.mxu0 0
    %534 = vmatpush2.bf16.xpose.msra.mxu0 0
    %535 = vmatprep.subr.bf16.mxu0 0
    %536 = vmatpush2.bf16.xpose.msra.mxu0 0
    %537 = vmatprep.subr.bf16.mxu0 0
    %538 = vmatpush2.bf16.xpose.msra.mxu0 0
    %539 = vmatprep.subr.bf16.mxu0 0
    %540 = vmatpush2.bf16.xpose.msra.mxu0 0
    %541 = vmatprep.subr.bf16.mxu0 0
    %542 = vmatpush2.bf16.xpose.msra.mxu0 0
    %543 = vmatprep.subr.bf16.mxu0 0
    %544 = vmatpush2.bf16.xpose.msra.mxu0 0
    %545 = vmatprep.mubr.bf16.mxu0 0
    %546 = vmatmul.mubr.bf16.gmra.mxu0 %v508
    %v547 = vpop.f32.mrf.mxu0
    %v548 = vadd.f32 %v30, %v547
    %v549 = vpop.f32.mrf.mxu0
    %v550 = vpop.f32.mrf.mxu0
    %v551 = vadd.f32 %v31, %v550
    %v552 = vpop.f32.mrf.mxu0
    %553 = vdwg.mxu0
    %v554 = vsel %vm190, %v548, -inf
    %555 = vmax.xlane.f32.xlu0 %v554
    %v556 = vpop.xlane.xlu0 %555
    %v557 = vsel %vm190, %v551, -inf
    %558 = vmax.xlane.f32.xlu0 %v557
    %v559 = vpop.xlane.xlu0 %558
    %v560 = vsub.f32 %v548, %v556
    %v561 = vsub.f32 %v551, %v559
    %v562 = vmul.f32 %v560, 1.442695
    %v563 = vpow.pop %v562
    %v564 = vmul.f32 %v561, 1.442695
    %v565 = vpow.pop %v564
    %v566 = vsel %vm190, %v563, 0.0
    %567 = vadd.xlane.f32.xlu0 %v566
    %v568 = vpop.xlane.xlu0 %567
    %v569 = vsel %vm190, %v565, 0.0
    %570 = vadd.xlane.f32.xlu0 %v569
    %v571 = vpop.xlane.xlu0 %570
    %v572 = vpack.c.bf16 %v565, %v563
    %573 = vrot.lane.b32.xlu0 %v138, 40
    %v574 = vpop.permute.xlu0 %573
    %v577 = vsel %vm190, %v572, 0
    %579 = vmatprep.subr.bf16.mxu0 0
    %580 = vmatpush1.bf16.msra.mxu0 0
    %581 = vmatprep.subr.bf16.mxu0 0
    %582 = vmatpush1.bf16.msra.mxu0 0
    %583 = vmatprep.subr.bf16.mxu0 0
    %584 = vmatpush1.bf16.msra.mxu0 0
    %585 = vmatprep.subr.bf16.mxu0 0
    %586 = vmatpush1.bf16.msra.mxu0 0
    %587 = vmatprep.subr.bf16.mxu0 0
    %588 = vmatpush1.bf16.msra.mxu0 0
    %589 = vmatprep.subr.bf16.mxu0 0
    %590 = vmatpush1.bf16.msra.mxu0 0
    %591 = vmatprep.subr.bf16.mxu0 0
    %592 = vmatpush1.bf16.msra.mxu0 0
    %593 = vmatprep.subr.bf16.mxu0 0
    %594 = vmatpush1.bf16.msra.mxu0 %v574
    %595 = vmatprep.subr.bf16.mxu0 0
    %596 = vmatpush2.bf16.msra.mxu0 0
    %597 = vmatprep.subr.bf16.mxu0 0
    %598 = vmatpush2.bf16.msra.mxu0 0
    %599 = vmatprep.subr.bf16.mxu0 0
    %600 = vmatpush2.bf16.msra.mxu0 0
    %601 = vmatprep.subr.bf16.mxu0 0
    %602 = vmatpush2.bf16.msra.mxu0 0
    %603 = vmatprep.subr.bf16.mxu0 0
    %604 = vmatpush2.bf16.msra.mxu0 0
    %605 = vmatprep.subr.bf16.mxu0 0
    %606 = vmatpush2.bf16.msra.mxu0 0
    %607 = vmatprep.subr.bf16.mxu0 0
    %608 = vmatpush2.bf16.msra.mxu0 0
    %609 = vmatprep.subr.bf16.mxu0 0
    %610 = vmatpush2.bf16.msra.mxu0 0
    %611 = vmatprep.mubr.bf16.mxu0 0
    %612 = vmatmul.mubr.bf16.gmra.mxu0 %v577
    %v613 = vpop.f32.mrf.mxu0
    %v614 = vadd.f32 0.0, %v613
    %v615 = vpop.f32.mrf.mxu0
    %v616 = vpop.f32.mrf.mxu0
    %v617 = vadd.f32 0.0, %v616
    %v618 = vpop.f32.mrf.mxu0
    %619 = vdwg.mxu0
    %v620 = vrcp.pop %v568
    %v621 = vrcp.pop %v571
    %v622 = vmul.f32 %v614, %v620
    %v623 = vmul.f32 %v617, %v621
    %626 = vrot.lane.b32.xlu0 %v380, 8
    %v627 = vpop.permute.xlu0 %626
    %628 = vrot.lane.b32.xlu0 %v381, 8
    %v629 = vpop.permute.xlu0 %628
    %634 = vrot.lane.b32.xlu0 %v501, 16
    %v635 = vpop.permute.xlu0 %634
    %636 = vrot.lane.b32.xlu0 %v502, 16
    %v637 = vpop.permute.xlu0 %636
    %642 = vrot.lane.b32.xlu0 %v622, 24
    %v643 = vpop.permute.xlu0 %642
    %644 = vrot.lane.b32.xlu0 %v623, 24
    %v645 = vpop.permute.xlu0 %644
    %v648 = vsel %vm142, %v259, %v627
    %v649 = vsel %vm142, %v260, %v629
    %v650 = vsel %vm190, %v648, %v635
    %v651 = vsel %vm190, %v649, %v637
    %vm652 = vcmask 195584
    %v653 = vsel %vm652, %v650, %v643
    %v654 = vsel %vm652, %v651, %v645
    %v655 = vpack.c.bf16 %v654, %v653
    %v656 = vld [vmem:[%s3] sm:$0xf]
    %v657 = vld [vmem:[%s3 + $0x4] sm:$0xf]
    %v658 = vld [vmem:[%s3 + $0x8] sm:$0xf]
    %v659 = vld [vmem:[%s3 + $0xc] sm:$0xf]
    %v660 = vlaneseq
    %v661 = vshrl.u32 %v660, 7
    %v662 = vsub.s32 5, %v661
    %v663 = vrot.slane %v32, %v662
    %v668 = vunpack.c.l.b16 %v656
    %v669 = vunpack.c.l.b16 %v657
    %v670 = vunpack.c.l.b16 %v658
    %v671 = vunpack.c.l.b16 %v659
    %v672 = vpack.c.b16 %v669, %v668
    %v673 = vpack.c.b16 %v671, %v670
    %v677 = vsel %vm33, %v655, 0
    %679 = vmatprep.subr.bf16.mxu0 0
    %680 = vmatpush1.bf16.msra.mxu0 0
    %681 = vmatprep.subr.bf16.mxu0 0
    %682 = vmatpush1.bf16.msra.mxu0 0
    %683 = vmatprep.subr.bf16.mxu0 0
    %684 = vmatpush1.bf16.msra.mxu0 0
    %685 = vmatprep.subr.bf16.mxu0 0
    %686 = vmatpush1.bf16.msra.mxu0 0
    %687 = vmatprep.subr.bf16.mxu0 0
    %688 = vmatpush1.bf16.msra.mxu0 0
    %689 = vmatprep.subr.bf16.mxu0 0
    %690 = vmatpush1.bf16.msra.mxu0 0
    %691 = vmatprep.subr.bf16.mxu0 0
    %692 = vmatpush1.bf16.msra.mxu0 %v673
    %693 = vmatprep.subr.bf16.mxu0 0
    %694 = vmatpush1.bf16.msra.mxu0 %v672
    %695 = vmatprep.subr.bf16.mxu0 0
    %696 = vmatpush2.bf16.msra.mxu0 0
    %697 = vmatprep.subr.bf16.mxu0 0
    %698 = vmatpush2.bf16.msra.mxu0 0
    %699 = vmatprep.subr.bf16.mxu0 0
    %700 = vmatpush2.bf16.msra.mxu0 0
    %701 = vmatprep.subr.bf16.mxu0 0
    %702 = vmatpush2.bf16.msra.mxu0 0
    %703 = vmatprep.subr.bf16.mxu0 0
    %704 = vmatpush2.bf16.msra.mxu0 0
    %705 = vmatprep.subr.bf16.mxu0 0
    %706 = vmatpush2.bf16.msra.mxu0 0
    %707 = vmatprep.subr.bf16.mxu0 0
    %708 = vmatpush2.bf16.msra.mxu0 0
    %709 = vmatprep.subr.bf16.mxu0 0
    %710 = vmatpush2.bf16.msra.mxu0 0
    %711 = vmatprep.mubr.bf16.mxu0 0
    %712 = vmatmul.mubr.bf16.gmra.mxu0 %v677
    %v713 = vpop.f32.mrf.mxu0
    %v714 = vadd.f32 %v663, %v713
    %v715 = vpop.f32.mrf.mxu0
    %v716 = vpop.f32.mrf.mxu0
    %v717 = vadd.f32 %v663, %v716
    %v718 = vpop.f32.mrf.mxu0
    %719 = vdwg.mxu0
    %v720 = vadd.f32 %v28, %v714
    %v721 = vadd.f32 %v29, %v717
    %v722 = vsel %vm33, %v720, 0.0
    %723 = vadd.xlane.f32.xlu0 %v722
    %v724 = vpop.xlane.xlu0 %723
    %v725 = vsel %vm33, %v721, 0.0
    %726 = vadd.xlane.f32.xlu0 %v725
    %v727 = vpop.xlane.xlu0 %726
    %v728 = vmul.f32 %v724, %v40
    %v729 = vmul.f32 %v727, %v40
    %v730 = vsub.f32 %v720, %v728
    %v731 = vsub.f32 %v721, %v729
    %v732 = vmul.f32 %v730, %v730
    %v733 = vmul.f32 %v731, %v731
    %v734 = vsel %vm33, %v732, 0.0
    %735 = vadd.xlane.f32.xlu0 %v734
    %v736 = vpop.xlane.xlu0 %735
    %v737 = vsel %vm33, %v733, 0.0
    %738 = vadd.xlane.f32.xlu0 %v737
    %v739 = vpop.xlane.xlu0 %738
    %v740 = vmul.f32 %v736, %v40
    %v741 = vmul.f32 %v739, %v40
    %v742 = vadd.f32 %v740, 1e-05
    %v743 = vadd.f32 %v741, 1e-05
    %v744 = vrsqrt.pop %v742
    %v745 = vrsqrt.pop %v743
    %v746 = vmul.f32 %v730, %v744
    %v747 = vmul.f32 %v731, %v745
    %v748 = vlaneseq
    %v749 = vshrl.u32 %v748, 7
    %v750 = vsub.s32 2, %v749
    %v751 = vrot.slane %v32, %v750
    %v752 = vmul.f32 %v746, %v751
    %v753 = vmul.f32 %v747, %v751
    %v754 = vlaneseq
    %v755 = vshrl.u32 %v754, 7
    %v756 = vsub.s32 3, %v755
    %v757 = vrot.slane %v32, %v756
    %v758 = vadd.f32 %v752, %v757
    %v759 = vadd.f32 %v753, %v757
    %v760 = vpack.c.bf16 %v759, %v758
    %v761 = vld [vmem:[%s4] sm:$0xf]
    %v762 = vld [vmem:[%s4 + $0x4] sm:$0xf]
    %v763 = vld [vmem:[%s4 + $0x8] sm:$0xf]
    %v764 = vld [vmem:[%s4 + $0xc] sm:$0xf]
    %v765 = vlaneseq
    %v766 = vshrl.u32 %v765, 7
    %v767 = vsub.s32 6, %v766
    %v768 = vrot.slane %v32, %v767
    %v773 = vunpack.c.l.b16 %v761
    %v774 = vunpack.c.l.b16 %v762
    %v775 = vunpack.c.l.b16 %v763
    %v776 = vunpack.c.l.b16 %v764
    %v777 = vpack.c.b16 %v774, %v773
    %v778 = vpack.c.b16 %v776, %v775
    %v782 = vsel %vm33, %v760, 0
    %784 = vmatprep.subr.bf16.mxu0 0
    %785 = vmatpush1.bf16.msra.mxu0 0
    %786 = vmatprep.subr.bf16.mxu0 0
    %787 = vmatpush1.bf16.msra.mxu0 0
    %788 = vmatprep.subr.bf16.mxu0 0
    %789 = vmatpush1.bf16.msra.mxu0 0
    %790 = vmatprep.subr.bf16.mxu0 0
    %791 = vmatpush1.bf16.msra.mxu0 0
    %792 = vmatprep.subr.bf16.mxu0 0
    %793 = vmatpush1.bf16.msra.mxu0 0
    %794 = vmatprep.subr.bf16.mxu0 0
    %795 = vmatpush1.bf16.msra.mxu0 0
    %796 = vmatprep.subr.bf16.mxu0 0
    %797 = vmatpush1.bf16.msra.mxu0 %v778
    %798 = vmatprep.subr.bf16.mxu0 0
    %799 = vmatpush1.bf16.msra.mxu0 %v777
    %800 = vmatprep.subr.bf16.mxu0 0
    %801 = vmatpush2.bf16.msra.mxu0 0
    %802 = vmatprep.subr.bf16.mxu0 0
    %803 = vmatpush2.bf16.msra.mxu0 0
    %804 = vmatprep.subr.bf16.mxu0 0
    %805 = vmatpush2.bf16.msra.mxu0 0
    %806 = vmatprep.subr.bf16.mxu0 0
    %807 = vmatpush2.bf16.msra.mxu0 0
    %808 = vmatprep.subr.bf16.mxu0 0
    %809 = vmatpush2.bf16.msra.mxu0 0
    %810 = vmatprep.subr.bf16.mxu0 0
    %811 = vmatpush2.bf16.msra.mxu0 0
    %812 = vmatprep.subr.bf16.mxu0 0
    %813 = vmatpush2.bf16.msra.mxu0 0
    %814 = vmatprep.subr.bf16.mxu0 0
    %815 = vmatpush2.bf16.msra.mxu0 0
    %816 = vmatprep.mubr.bf16.mxu0 0
    %817 = vmatmul.mubr.bf16.gmra.mxu0 %v782
    %v818 = vpop.f32.mrf.mxu0
    %v819 = vadd.f32 %v768, %v818
    %v820 = vpop.f32.mrf.mxu0
    %v821 = vpop.f32.mrf.mxu0
    %v822 = vadd.f32 %v768, %v821
    %v823 = vpop.f32.mrf.mxu0
    %824 = vdwg.mxu0
    %v825 = vmul.f32 %v819, 0.5
    %v826 = vmul.f32 %v822, 0.5
    %v827 = vrcp.pop 1.4142135
    %v828 = vmul.f32 %v819, %v827
    %v829 = vmul.f32 %v822, %v827
    %v830 = verf.f32.pop %v828
    %v831 = verf.f32.pop %v829
    %v832 = vadd.f32 %v830, 1.0
    %v833 = vadd.f32 %v831, 1.0
    %v834 = vmul.f32 %v825, %v832
    %v835 = vmul.f32 %v826, %v833
    %v836 = vpack.c.bf16 %v835, %v834
    %v837 = vld [vmem:[%s5] sm:$0xf]
    %v838 = vld [vmem:[%s5 + $0x4] sm:$0xf]
    %v839 = vld [vmem:[%s5 + $0x8] sm:$0xf]
    %v840 = vld [vmem:[%s5 + $0xc] sm:$0xf]
    %v841 = vld [vmem:[%s5 + $0x10] sm:$0xf]
    %v842 = vld [vmem:[%s5 + $0x14] sm:$0xf]
    %v843 = vld [vmem:[%s5 + $0x18] sm:$0xf]
    %v844 = vld [vmem:[%s5 + $0x1c] sm:$0xf]
    %v845 = vld [vmem:[%s5 + $0x20] sm:$0xf]
    %v846 = vld [vmem:[%s5 + $0x24] sm:$0xf]
    %v847 = vld [vmem:[%s5 + $0x28] sm:$0xf]
    %v848 = vld [vmem:[%s5 + $0x2c] sm:$0xf]
    %v849 = vld [vmem:[%s5 + $0x30] sm:$0xf]
    %v850 = vld [vmem:[%s5 + $0x34] sm:$0xf]
    %v851 = vld [vmem:[%s5 + $0x38] sm:$0xf]
    %v852 = vld [vmem:[%s5 + $0x3c] sm:$0xf]
    %v853 = vlaneseq
    %v854 = vshrl.u32 %v853, 7
    %v855 = vsub.s32 7, %v854
    %v856 = vrot.slane %v32, %v855
    %v873 = vunpack.c.l.b16 %v837
    %v874 = vunpack.c.l.b16 %v838
    %v875 = vunpack.c.l.b16 %v839
    %v876 = vunpack.c.l.b16 %v840
    %v877 = vunpack.c.l.b16 %v841
    %v878 = vunpack.c.l.b16 %v842
    %v879 = vunpack.c.l.b16 %v843
    %v880 = vunpack.c.l.b16 %v844
    %v881 = vunpack.c.l.b16 %v845
    %v882 = vunpack.c.l.b16 %v846
    %v883 = vunpack.c.l.b16 %v847
    %v884 = vunpack.c.l.b16 %v848
    %v885 = vunpack.c.l.b16 %v849
    %v886 = vunpack.c.l.b16 %v850
    %v887 = vunpack.c.l.b16 %v851
    %v888 = vunpack.c.l.b16 %v852
    %v889 = vpack.c.b16 %v874, %v873
    %v890 = vpack.c.b16 %v876, %v875
    %v891 = vpack.c.b16 %v878, %v877
    %v892 = vpack.c.b16 %v880, %v879
    %v893 = vpack.c.b16 %v882, %v881
    %v894 = vpack.c.b16 %v884, %v883
    %v895 = vpack.c.b16 %v886, %v885
    %v896 = vpack.c.b16 %v888, %v887
    %905 = vmatprep.subr.bf16.mxu0 0
    %906 = vmatpush1.bf16.msra.mxu0 %v896
    %907 = vmatprep.subr.bf16.mxu0 0
    %908 = vmatpush1.bf16.msra.mxu0 %v895
    %909 = vmatprep.subr.bf16.mxu0 0
    %910 = vmatpush1.bf16.msra.mxu0 %v894
    %911 = vmatprep.subr.bf16.mxu0 0
    %912 = vmatpush1.bf16.msra.mxu0 %v893
    %913 = vmatprep.subr.bf16.mxu0 0
    %914 = vmatpush1.bf16.msra.mxu0 %v892
    %915 = vmatprep.subr.bf16.mxu0 0
    %916 = vmatpush1.bf16.msra.mxu0 %v891
    %917 = vmatprep.subr.bf16.mxu0 0
    %918 = vmatpush1.bf16.msra.mxu0 %v890
    %919 = vmatprep.subr.bf16.mxu0 0
    %920 = vmatpush1.bf16.msra.mxu0 %v889
    %921 = vmatprep.subr.bf16.mxu0 0
    %922 = vmatpush2.bf16.msra.mxu0 0
    %923 = vmatprep.subr.bf16.mxu0 0
    %924 = vmatpush2.bf16.msra.mxu0 0
    %925 = vmatprep.subr.bf16.mxu0 0
    %926 = vmatpush2.bf16.msra.mxu0 0
    %927 = vmatprep.subr.bf16.mxu0 0
    %928 = vmatpush2.bf16.msra.mxu0 0
    %929 = vmatprep.subr.bf16.mxu0 0
    %930 = vmatpush2.bf16.msra.mxu0 0
    %931 = vmatprep.subr.bf16.mxu0 0
    %932 = vmatpush2.bf16.msra.mxu0 0
    %933 = vmatprep.subr.bf16.mxu0 0
    %934 = vmatpush2.bf16.msra.mxu0 0
    %935 = vmatprep.subr.bf16.mxu0 0
    %936 = vmatpush2.bf16.msra.mxu0 0
    %937 = vmatprep.mubr.bf16.mxu0 0
    %938 = vmatmul.mubr.bf16.gmra.mxu0 %v836
    %v939 = vpop.f32.mrf.mxu0
    %v940 = vadd.f32 %v856, %v939
    %v941 = vpop.f32.mrf.mxu0
    %v942 = vpop.f32.mrf.mxu0
    %v943 = vadd.f32 %v856, %v942
    %v944 = vpop.f32.mrf.mxu0
    %945 = vdwg.mxu0
    %v946 = vadd.f32 %v720, %v940
    %v947 = vadd.f32 %v721, %v943
    %948 = vst.msk [vmem:[#allocation2] sm:$0xff] %vm33, %v946
    %949 = vst.msk [vmem:[#allocation2 + $0x8] sm:$0xff] %vm33, %v947
    // Predicated region
    $region30: #{tpu_custom_call.1} parent=1 // pred_check
      _
    $region31: #{tpu_custom_call.1} parent=1 // pred_check_branch
      %951 = sbr.rel (0) target = $region33
    $region32: #{tpu_custom_call.1} parent=1 // pred_region
      %s953 = ssub.s32 256, 256
      %954 = vsyncadd [#allocation3], %s953
      %s955 = sshll.u32 [#allocation2], 4
      %s956 = int_to_ptr.vmem [resolvable:$true] %s955
      %961 = dma.vmem_to_hbm [thread:$0]  %s956, 256, %s7, [#allocation3], 128, 128, 8
    $region33: #{tpu_custom_call.1} parent=1 // pred_fallthru
      _
    // Predicated region
    $region34: #{tpu_custom_call.1} parent=1 // pred_check
      _
    $region35: #{tpu_custom_call.1} parent=1 // pred_check_branch
      %963 = sbr.rel (0) target = $region37
    $region36: #{tpu_custom_call.1} parent=1 // pred_region
      %964 = dma.done [#allocation3], 256
    $region37: #{tpu_custom_call.1} parent=1 // pred_fallthru
      _
    %965 = vsyncpa [#allocation3], 1

</llo_original>
